<compile_context>
chip_gen: v5e
topology: v5e:2x2
jax: 0.10.0
libtpu: 0.0.40
codegen_flags: <defaults>
</compile_context>

<pallas_src>
import functools

import jax
import jax.numpy as jnp
from jax.experimental import pallas as pl
from jax.experimental.pallas import tpu as pltpu


def _round_up(x, m):
    return (x + m - 1) // m * m


# --------------------------------------------------------------------------
# Kernel
# --------------------------------------------------------------------------
def _critic_kernel(obs_ref, act_ref, wt_ref, wq_ref, wd_ref, b_ref, out_ref, *,
                   feature_dim, action_dim, hidden_dim, n_head,
                   fw, hw, ow, r_w1h, r_w1a, r_w2, apply_softmax):
    F, A, N = feature_dim, action_dim, n_head
    bf = jnp.bfloat16

    obs = obs_ref[...]                              # (tb, R)  bf16
    act = act_ref[...]                              # (tb, A)  bf16

    wt = wt_ref[...]                                # (R, fw)  bf16
    w1h = wq_ref[r_w1h:r_w1h + fw, :]               # (fw, hw) fused Q1|Q2 layer-1, h part
    w1a = wq_ref[r_w1a:r_w1a + A, :]                # (A,  hw) fused Q1|Q2 layer-1, action part
    w2 = wq_ref[r_w2:r_w2 + hw, :]                  # (hw, hw) block-diag layer-2
    wd = wd_ref[...]                                # (hw, ow) block-diag head

    bt    = b_ref[0:1, 0:fw]
    gamma = b_ref[1:2, 0:fw]
    beta  = b_ref[2:3, 0:fw]
    b1    = b_ref[3:4, 0:hw]
    b2    = b_ref[4:5, 0:hw]
    bd    = b_ref[5:6, 0:ow]

    # ---- trunk: Linear -> LayerNorm -> Tanh (LN math in f32, pad lanes masked) ----
    z = jnp.dot(obs, wt, preferred_element_type=jnp.float32) + bt        # (tb, fw)
    lane_f = jax.lax.broadcasted_iota(jnp.int32, z.shape, 1)
    mask_f = lane_f < F
    mu = jnp.sum(jnp.where(mask_f, z, 0.0), axis=-1, keepdims=True) * (1.0 / F)
    diff = jnp.where(mask_f, z - mu, 0.0)
    var = jnp.sum(diff * diff, axis=-1, keepdims=True) * (1.0 / F)
    h = jnp.tanh(diff * jax.lax.rsqrt(var + 1e-5) * gamma + beta)        # pad lanes -> 0

    # ---- both Q heads, layer 1 (fused along lanes; concat avoided via split dot) ----
    x = (jnp.dot(h.astype(bf), w1h, preferred_element_type=jnp.float32)
         + jnp.dot(act, w1a, preferred_element_type=jnp.float32)
         + b1)
    x = jnp.maximum(x, 0.0)                                              # pad lanes stay 0

    # ---- both Q heads, layer 2 (block-diagonal weight) ----
    x = jnp.dot(x.astype(bf), w2, preferred_element_type=jnp.float32) + b2
    x = jnp.maximum(x, 0.0)

    # ---- heads (block-diagonal): logits over lanes [Q1 | Q2 | zero pad] ----
    logits = jnp.dot(x.astype(bf), wd, preferred_element_type=jnp.float32) + bd

    lane = jax.lax.broadcasted_iota(jnp.int32, logits.shape, 1)
    seg1 = lane < N
    seg2 = jnp.logical_and(lane >= N, lane < 2 * N)
    valid = lane < 2 * N

    if apply_softmax:
        neg = -jnp.inf
        m1 = jnp.max(jnp.where(seg1, logits, neg), axis=-1, keepdims=True)
        m2 = jnp.max(jnp.where(seg2, logits, neg), axis=-1, keepdims=True)
        e = jnp.exp(logits - jnp.where(seg1, m1, m2))
        d1 = jnp.sum(jnp.where(seg1, e, 0.0), axis=-1, keepdims=True)
        d2 = jnp.sum(jnp.where(seg2, e, 0.0), axis=-1, keepdims=True)
        p = e * pl.reciprocal(jnp.where(seg1, d1, d2), approx=True)
        out_ref[...] = jnp.where(valid, p, 0.0)
    else:
        out_ref[...] = jnp.where(valid, logits, 0.0)


# --------------------------------------------------------------------------
# Host-side parameter packing (grouped by column width, all widths % 128 == 0)
# --------------------------------------------------------------------------
def pack_params(params, repr_dim, action_dim, feature_dim, hidden_dim, *,
                categorical=True):
    R, A, F, H = repr_dim, action_dim, feature_dim, hidden_dim
    bf = jnp.bfloat16

    if categorical:
        hd1w, hd1b = params['fc_dist_q1_w'], params['fc_dist_q1_b']
        hd2w, hd2b = params['fc_dist_q2_w'], params['fc_dist_q2_b']
    else:
        hd1w, hd1b = params['fc_q1_w'], params['fc_q1_b']
        hd2w, hd2b = params['fc_q2_w'], params['fc_q2_b']
    N = int(hd1w.shape[1])

    fw = _round_up(F, 128)
    hw = _round_up(2 * H, 128)
    ow = _round_up(2 * N, 128)
    bw = max(fw, hw, ow)

    # Trunk weight gets its own slab at its own width (NOT padded to the Q-layer
    # width): at real drqv2 sizes repr_dim is huge and max-width padding would
    # explode DMA bytes and blow v7x's 64 MiB VMEM.
    wt_slab = jnp.zeros((R, fw), bf).at[:, :F].set(params['trunk_w'].astype(bf))

    # Fused twin-Q slab (width hw): [w1h ; w1a ; block-diag(w2)], 16-row aligned.
    q1w1, q2w1 = params['q1_w1'], params['q2_w1']
    w1h = jnp.concatenate([q1w1[:F], q2w1[:F]], axis=1)                  # (F, 2H)
    w1a = jnp.concatenate([q1w1[F:], q2w1[F:]], axis=1)                  # (A, 2H)
    zH = jnp.zeros((H, H), jnp.float32)
    w2bd = jnp.block([[params['q1_w2'], zH], [zH, params['q2_w2']]])     # (2H, 2H)

    r_w1h, r_w1a = 0, fw
    r_w2 = fw + _round_up(A, 16)
    wq_slab = jnp.zeros((r_w2 + hw, hw), bf)
    wq_slab = wq_slab.at[r_w1h:r_w1h + F, :2 * H].set(w1h.astype(bf))
    wq_slab = wq_slab.at[r_w1a:r_w1a + A, :2 * H].set(w1a.astype(bf))
    wq_slab = wq_slab.at[r_w2:r_w2 + 2 * H, :2 * H].set(w2bd.astype(bf))

    # Block-diagonal head slab, lane-padded to a 128 multiple -> lane-dense out.
    zN = jnp.zeros((H, N), jnp.float32)
    wdbd = jnp.block([[hd1w, zN], [zN, hd2w]])                           # (2H, 2N)
    wd_slab = jnp.zeros((hw, ow), bf).at[:2 * H, :2 * N].set(wdbd.astype(bf))

    # Bias slab (f32): one row per bias vector, pad lanes zero.
    b_slab = jnp.zeros((8, bw), jnp.float32)
    b_slab = b_slab.at[0, :F].set(params['trunk_b'])
    b_slab = b_slab.at[1, :F].set(params['ln_g'])
    b_slab = b_slab.at[2, :F].set(params['ln_b'])
    b_slab = b_slab.at[3, :2 * H].set(jnp.concatenate([params['q1_b1'], params['q2_b1']]))
    b_slab = b_slab.at[4, :2 * H].set(jnp.concatenate([params['q1_b2'], params['q2_b2']]))
    b_slab = b_slab.at[5, :2 * N].set(jnp.concatenate([hd1b, hd2b]))

    meta = dict(repr_dim=R, action_dim=A, feature_dim=F, hidden_dim=H,
                n_head=N, fw=fw, hw=hw, ow=ow,
                r_w1h=r_w1h, r_w1a=r_w1a, r_w2=r_w2,
                apply_softmax=bool(categorical))
    return (wt_slab, wq_slab, wd_slab, b_slab), meta


# --------------------------------------------------------------------------
# Wrapper
# --------------------------------------------------------------------------
def critic_forward(obs, action, packed, *, batch_block=None):
    """Returns (q1, q2).

    batch_block=None -> gridless single shot (small batches; pins one TC).
    For large batches pick batch_block so the obs block is hundreds of KB and
    the grid has >= 2 (ideally even) steps: with dimension_semantics=("parallel",)
    the blocks shard across v7x's two TensorCores.
    """
    (wt_slab, wq_slab, wd_slab, b_slab), meta = packed
    R, A = meta['repr_dim'], meta['action_dim']
    N, fw, hw, ow = meta['n_head'], meta['fw'], meta['hw'], meta['ow']
    B = obs.shape[0]

    # bf16 inputs: halves the dominant obs DMA; MXU math already runs in bf16.
    obs = obs.astype(jnp.bfloat16)
    action = action.astype(jnp.bfloat16)

    kernel = functools.partial(
        _critic_kernel,
        feature_dim=meta['feature_dim'], action_dim=A,
        hidden_dim=meta['hidden_dim'], n_head=N,
        fw=fw, hw=hw, ow=ow,
        r_w1h=meta['r_w1h'], r_w1a=meta['r_w1a'], r_w2=meta['r_w2'],
        apply_softmax=meta['apply_softmax'])

    slab_bytes = sum(int(x.size) * x.dtype.itemsize
                     for x in (wt_slab, wq_slab, wd_slab, b_slab))

    def cost(nrows):
        flops = 2 * nrows * (R * fw + fw * hw + A * hw + hw * hw + hw * ow)
        return pl.CostEstimate(
            flops=int(flops),
            transcendentals=int(nrows * (fw + ow + 2)),
            bytes_accessed=int(slab_bytes + nrows * (R + A) * 2 + nrows * ow * 4))

    if batch_block is None or batch_block >= B:
        out = pl.pallas_call(
            kernel,
            out_shape=jax.ShapeDtypeStruct((B, ow), jnp.float32),
            cost_estimate=cost(B),
        )(obs, action, wt_slab, wq_slab, wd_slab, b_slab)
    else:
        tb = batch_block
        bp = _round_up(B, tb)
        if bp != B:
            # Zero-padded rows run finite (all-zero) math; sliced away below.
            obs = jnp.pad(obs, ((0, bp - B), (0, 0)))
            action = jnp.pad(action, ((0, bp - B), (0, 0)))

        def call(single_buffer):
            extra = {"pipeline_mode": pl.Buffered(1)} if single_buffer else {}
            const = lambda shp: pl.BlockSpec(shp, lambda i: (0, 0), **extra)
            return pl.pallas_call(
                kernel,
                out_shape=jax.ShapeDtypeStruct((bp, ow), jnp.float32),
                grid=(bp // tb,),
                in_specs=[
                    pl.BlockSpec((tb, R), lambda i: (i, 0)),
                    pl.BlockSpec((tb, A), lambda i: (i, 0)),
                    const(wt_slab.shape), const(wq_slab.shape),
                    const(wd_slab.shape), const(b_slab.shape),
                ],
                out_specs=pl.BlockSpec((tb, ow), lambda i: (i, 0)),
                compiler_params=pltpu.CompilerParams(
                    dimension_semantics=("parallel",)),
                cost_estimate=cost(bp),
            )(obs, action, wt_slab, wq_slab, wd_slab, b_slab)

        try:
            # Single-buffer the grid-constant slabs (halves weight VMEM on v7x).
            out = call(True)
        except Exception:
            # Graceful fallback if this build rejects pipeline_mode/Buffered(1).
            out = call(False)
        out = out[:B]

    return out[:, :N], out[:, N:2 * N]


# --------------------------------------------------------------------------
# Synthetic init + pure-JAX reference (mirrors the kernel's bf16 MXU math)
# --------------------------------------------------------------------------
def init_params(key, repr_dim, action_dim, feature_dim, hidden_dim, n_atoms):
    ks = iter(jax.random.split(key, 20))
    w = lambda s: (0.1 * jax.random.normal(next(ks), s)).astype(jnp.float32)
    b = lambda s: (0.05 * jax.random.normal(next(ks), s)).astype(jnp.float32)
    F, A, H, N = feature_dim, action_dim, hidden_dim, n_atoms
    return {
        'trunk_w': w((repr_dim, F)), 'trunk_b': b((F,)),
        'ln_g': 1.0 + b((F,)), 'ln_b': b((F,)),
        'q1_w1': w((F + A, H)), 'q1_b1': b((H,)),
        'q1_w2': w((H, H)), 'q1_b2': b((H,)),
        'q2_w1': w((F + A, H)), 'q2_b1': b((H,)),
        'q2_w2': w((H, H)), 'q2_b2': b((H,)),
        'fc_q1_w': w((H, 1)), 'fc_q1_b': b((1,)),
        'fc_q2_w': w((H, 1)), 'fc_q2_b': b((1,)),
        'fc_dist_q1_w': w((H, N)), 'fc_dist_q1_b': b((N,)),
        'fc_dist_q2_w': w((H, N)), 'fc_dist_q2_b': b((N,)),
    }


def _reference(obs, action, params, *, categorical=True):
    bf = jnp.bfloat16
    obs = obs.astype(bf)
    action = action.astype(bf)

    def mm(a, w):
        return jnp.dot(a.astype(bf), w.astype(bf),
                       preferred_element_type=jnp.float32)

    z = mm(obs, params['trunk_w']) + params['trunk_b']
    mu = z.mean(-1, keepdims=True)
    var = ((z - mu) ** 2).mean(-1, keepdims=True)
    h = jnp.tanh((z - mu) * jax.lax.rsqrt(var + 1e-5) * params['ln_g']
                 + params['ln_b'])
    ha = jnp.concatenate([h, action.astype(jnp.float32)], axis=-1)

    def q_mlp(p):
        x = jnp.maximum(mm(ha, params[p + '_w1']) + params[p + '_b1'], 0.0)
        return jnp.maximum(mm(x, params[p + '_w2']) + params[p + '_b2'], 0.0)

    x1, x2 = q_mlp('q1'), q_mlp('q2')
    if categorical:
        q1 = jax.nn.softmax(mm(x1, params['fc_dist_q1_w']) + params['fc_dist_q1_b'], -1)
        q2 = jax.nn.softmax(mm(x2, params['fc_dist_q2_w']) + params['fc_dist_q2_b'], -1)
    else:
        q1 = mm(x1, params['fc_q1_w']) + params['fc_q1_b']
        q2 = mm(x2, params['fc_q2_w']) + params['fc_q2_b']
    return q1, q2


# --------------------------------------------------------------------------
if __name__ == "__main__":
    B, repr_dim, action_dim = 8, 64, 8
    feature_dim, hidden_dim, n_atoms = 32, 32, 16

    key = jax.random.PRNGKey(0)
    kp, ko, ka, ko2, ka2 = jax.random.split(key, 5)
    params = init_params(kp, repr_dim, action_dim, feature_dim, hidden_dim, n_atoms)
    obs = jax.random.normal(ko, (B, repr_dim), jnp.float32)
    action = jax.random.uniform(ka, (B, action_dim), jnp.float32,
                                minval=-1.0, maxval=1.0)

    packed_cat = pack_params(params, repr_dim, action_dim, feature_dim,
                             hidden_dim, categorical=True)

    # 1) categorical head, small batch -> gridless single-shot kernel.
    q1, q2 = critic_forward(obs, action, packed_cat)
    jax.block_until_ready((q1, q2))
    r1, r2 = _reference(obs, action, params, categorical=True)
    assert q1.shape == (B, n_atoms) and q2.shape == (B, n_atoms)
    # approx reciprocal in the softmax denom -> ~1e-3-scale tolerance.
    assert jnp.allclose(q1, r1, atol=2e-3, rtol=2e-3), float(jnp.max(jnp.abs(q1 - r1)))
    assert jnp.allclose(q2, r2, atol=2e-3, rtol=2e-3), float(jnp.max(jnp.abs(q2 - r2)))

    # 2) categorical head, larger non-divisible batch -> parallel batch grid
    #    (2 grid steps -> shards across both TensorCores on v7x).
    B2 = 200
    obs2 = jax.random.normal(ko2, (B2, repr_dim), jnp.float32)
    action2 = jax.random.uniform(ka2, (B2, action_dim), jnp.float32,
                                 minval=-1.0, maxval=1.0)
    g1, g2 = critic_forward(obs2, action2, packed_cat, batch_block=128)
    jax.block_until_ready((g1, g2))
    s1, s2 = _reference(obs2, action2, params, categorical=True)
    assert g1.shape == (B2, n_atoms) and g2.shape == (B2, n_atoms)
    assert jnp.allclose(g1, s1, atol=2e-3, rtol=2e-3), float(jnp.max(jnp.abs(g1 - s1)))
    assert jnp.allclose(g2, s2, atol=2e-3, rtol=2e-3), float(jnp.max(jnp.abs(g2 - s2)))

    # 3) scalar (non-categorical) head: fc_q1 / fc_q2, no softmax.
    packed_sca = pack_params(params, repr_dim, action_dim, feature_dim,
                             hidden_dim, categorical=False)
    p1, p2 = critic_forward(obs, action, packed_sca)
    jax.block_until_ready((p1, p2))
    t1, t2 = _reference(obs, action, params, categorical=False)
    assert p1.shape == (B, 1) and p2.shape == (B, 1)
    assert jnp.allclose(p1, t1, atol=5e-4, rtol=5e-4), float(jnp.max(jnp.abs(p1 - t1)))
    assert jnp.allclose(p2, t2, atol=5e-4, rtol=5e-4), float(jnp.max(jnp.abs(p2 - t2)))

    print("KERNEL_OK")
</pallas_src>

<mosaic_0001>
module attributes {stable_mosaic.version = 11 : i64} {
  func.func @_critic_kernel(%arg0: memref<8x64xbf16, #tpu.memory_space<vmem>>, %arg1: memref<8x8xbf16, #tpu.memory_space<vmem>>, %arg2: memref<64x128xbf16, #tpu.memory_space<vmem>>, %arg3: memref<272x128xbf16, #tpu.memory_space<vmem>>, %arg4: memref<128x128xbf16, #tpu.memory_space<vmem>>, %arg5: memref<8x128xf32, #tpu.memory_space<vmem>>, %arg6: memref<8x128xf32, #tpu.memory_space<vmem>>) attributes {dimension_semantics = [], scalar_prefetch = 0 : i64, scratch_operands = 0 : i64, tpu.core_type = #tpu.core_type<tc>} {
    %c0 = arith.constant 0 : index
    %c0_0 = arith.constant 0 : index
    %0 = vector.load %arg0[%c0, %c0_0] : memref<8x64xbf16, #tpu.memory_space<vmem>>, vector<8x64xbf16>
    %c0_1 = arith.constant 0 : index
    %c0_2 = arith.constant 0 : index
    %1 = vector.load %arg1[%c0_1, %c0_2] : memref<8x8xbf16, #tpu.memory_space<vmem>>, vector<8x8xbf16>
    %c0_3 = arith.constant 0 : index
    %c0_4 = arith.constant 0 : index
    %2 = vector.load %arg2[%c0_3, %c0_4] : memref<64x128xbf16, #tpu.memory_space<vmem>>, vector<64x128xbf16>
    %c0_5 = arith.constant 0 : index
    %c0_6 = arith.constant 0 : index
    %3 = vector.load %arg3[%c0_5, %c0_6] : memref<272x128xbf16, #tpu.memory_space<vmem>>, vector<128x128xbf16>
    %c128 = arith.constant 128 : index
    %c0_7 = arith.constant 0 : index
    %4 = vector.load %arg3[%c128, %c0_7] : memref<272x128xbf16, #tpu.memory_space<vmem>>, vector<8x128xbf16>
    %c144 = arith.constant 144 : index
    %c0_8 = arith.constant 0 : index
    %5 = vector.load %arg3[%c144, %c0_8] : memref<272x128xbf16, #tpu.memory_space<vmem>>, vector<128x128xbf16>
    %c0_9 = arith.constant 0 : index
    %c0_10 = arith.constant 0 : index
    %6 = vector.load %arg4[%c0_9, %c0_10] : memref<128x128xbf16, #tpu.memory_space<vmem>>, vector<128x128xbf16>
    %c0_11 = arith.constant 0 : index
    %c0_12 = arith.constant 0 : index
    %7 = vector.load %arg5[%c0_11, %c0_12] : memref<8x128xf32, #tpu.memory_space<vmem>>, vector<1x128xf32>
    %c1 = arith.constant 1 : index
    %c0_13 = arith.constant 0 : index
    %8 = vector.load %arg5[%c1, %c0_13] : memref<8x128xf32, #tpu.memory_space<vmem>>, vector<1x128xf32>
    %c2 = arith.constant 2 : index
    %c0_14 = arith.constant 0 : index
    %9 = vector.load %arg5[%c2, %c0_14] : memref<8x128xf32, #tpu.memory_space<vmem>>, vector<1x128xf32>
    %c3 = arith.constant 3 : index
    %c0_15 = arith.constant 0 : index
    %10 = vector.load %arg5[%c3, %c0_15] : memref<8x128xf32, #tpu.memory_space<vmem>>, vector<1x128xf32>
    %c4 = arith.constant 4 : index
    %c0_16 = arith.constant 0 : index
    %11 = vector.load %arg5[%c4, %c0_16] : memref<8x128xf32, #tpu.memory_space<vmem>>, vector<1x128xf32>
    %c5 = arith.constant 5 : index
    %c0_17 = arith.constant 0 : index
    %12 = vector.load %arg5[%c5, %c0_17] : memref<8x128xf32, #tpu.memory_space<vmem>>, vector<1x128xf32>
    %cst = arith.constant dense<0.000000e+00> : vector<8x128xf32>
    %13 = tpu.matmul %0, %2, %cst {dimension_numbers = #tpu.dot_dimension_numbers<[1], [0], [0], [1], [0, 0, 1, 1], [], []>} : vector<8x64xbf16>, vector<64x128xbf16>, vector<8x128xf32> -> vector<8x128xf32>
    %14 = vector.broadcast %7 : vector<1x128xf32> to vector<8x128xf32>
    %15 = arith.addf %13, %14 : vector<8x128xf32>
    %16 = tpu.iota {dimensions = array<i32: 1>} : vector<8x128xi32>
    %c32_i32 = arith.constant 32 : i32
    %17 = vector.broadcast %c32_i32 : i32 to vector<8x128xi32>
    %18 = arith.cmpi slt, %16, %17 : vector<8x128xi32>
    %cst_18 = arith.constant 0.000000e+00 : f32
    %19 = vector.broadcast %cst_18 : f32 to vector<8x128xf32>
    %20 = arith.select %18, %15, %19 : vector<8x128xi1>, vector<8x128xf32>
    %cst_19 = arith.constant dense<0.000000e+00> : vector<8xf32>
    %21 = vector.multi_reduction <add>, %20, %cst_19 [1] : vector<8x128xf32> to vector<8xf32>
    %22 = vector.shape_cast %21 : vector<8xf32> to vector<8x1xf32>
    %cst_20 = arith.constant 3.125000e-02 : f32
    %23 = vector.broadcast %cst_20 : f32 to vector<8x1xf32>
    %24 = arith.mulf %22, %23 : vector<8x1xf32>
    %25 = vector.broadcast %24 : vector<8x1xf32> to vector<8x128xf32>
    %26 = arith.subf %15, %25 : vector<8x128xf32>
    %cst_21 = arith.constant 0.000000e+00 : f32
    %27 = vector.broadcast %cst_21 : f32 to vector<8x128xf32>
    %28 = arith.select %18, %26, %27 : vector<8x128xi1>, vector<8x128xf32>
    %29 = arith.mulf %28, %28 : vector<8x128xf32>
    %cst_22 = arith.constant dense<0.000000e+00> : vector<8xf32>
    %30 = vector.multi_reduction <add>, %29, %cst_22 [1] : vector<8x128xf32> to vector<8xf32>
    %31 = vector.shape_cast %30 : vector<8xf32> to vector<8x1xf32>
    %cst_23 = arith.constant 3.125000e-02 : f32
    %32 = vector.broadcast %cst_23 : f32 to vector<8x1xf32>
    %33 = arith.mulf %31, %32 : vector<8x1xf32>
    %cst_24 = arith.constant 9.99999974E-6 : f32
    %34 = vector.broadcast %cst_24 : f32 to vector<8x1xf32>
    %35 = arith.addf %33, %34 : vector<8x1xf32>
    %36 = math.rsqrt %35 : vector<8x1xf32>
    %37 = vector.broadcast %36 : vector<8x1xf32> to vector<8x128xf32>
    %38 = arith.mulf %28, %37 : vector<8x128xf32>
    %39 = vector.broadcast %8 : vector<1x128xf32> to vector<8x128xf32>
    %40 = arith.mulf %38, %39 : vector<8x128xf32>
    %41 = vector.broadcast %9 : vector<1x128xf32> to vector<8x128xf32>
    %42 = arith.addf %40, %41 : vector<8x128xf32>
    %43 = math.tanh %42 : vector<8x128xf32>
    %44 = arith.truncf %43 : vector<8x128xf32> to vector<8x128xbf16>
    %cst_25 = arith.constant dense<0.000000e+00> : vector<8x128xf32>
    %45 = tpu.matmul %44, %3, %cst_25 {dimension_numbers = #tpu.dot_dimension_numbers<[1], [0], [0], [1], [0, 0, 1, 1], [], []>} : vector<8x128xbf16>, vector<128x128xbf16>, vector<8x128xf32> -> vector<8x128xf32>
    %cst_26 = arith.constant dense<0.000000e+00> : vector<8x128xf32>
    %46 = tpu.matmul %1, %4, %cst_26 {dimension_numbers = #tpu.dot_dimension_numbers<[1], [0], [0], [1], [0, 0, 1, 1], [], []>} : vector<8x8xbf16>, vector<8x128xbf16>, vector<8x128xf32> -> vector<8x128xf32>
    %47 = arith.addf %45, %46 : vector<8x128xf32>
    %48 = vector.broadcast %10 : vector<1x128xf32> to vector<8x128xf32>
    %49 = arith.addf %47, %48 : vector<8x128xf32>
    %cst_27 = arith.constant 0.000000e+00 : f32
    %50 = vector.broadcast %cst_27 : f32 to vector<8x128xf32>
    %51 = arith.maximumf %49, %50 : vector<8x128xf32>
    %52 = arith.truncf %51 : vector<8x128xf32> to vector<8x128xbf16>
    %cst_28 = arith.constant dense<0.000000e+00> : vector<8x128xf32>
    %53 = tpu.matmul %52, %5, %cst_28 {dimension_numbers = #tpu.dot_dimension_numbers<[1], [0], [0], [1], [0, 0, 1, 1], [], []>} : vector<8x128xbf16>, vector<128x128xbf16>, vector<8x128xf32> -> vector<8x128xf32>
    %54 = vector.broadcast %11 : vector<1x128xf32> to vector<8x128xf32>
    %55 = arith.addf %53, %54 : vector<8x128xf32>
    %cst_29 = arith.constant 0.000000e+00 : f32
    %56 = vector.broadcast %cst_29 : f32 to vector<8x128xf32>
    %57 = arith.maximumf %55, %56 : vector<8x128xf32>
    %58 = arith.truncf %57 : vector<8x128xf32> to vector<8x128xbf16>
    %cst_30 = arith.constant dense<0.000000e+00> : vector<8x128xf32>
    %59 = tpu.matmul %58, %6, %cst_30 {dimension_numbers = #tpu.dot_dimension_numbers<[1], [0], [0], [1], [0, 0, 1, 1], [], []>} : vector<8x128xbf16>, vector<128x128xbf16>, vector<8x128xf32> -> vector<8x128xf32>
    %60 = vector.broadcast %12 : vector<1x128xf32> to vector<8x128xf32>
    %61 = arith.addf %59, %60 : vector<8x128xf32>
    %62 = tpu.iota {dimensions = array<i32: 1>} : vector<8x128xi32>
    %c16_i32 = arith.constant 16 : i32
    %63 = vector.broadcast %c16_i32 : i32 to vector<8x128xi32>
    %64 = arith.cmpi slt, %62, %63 : vector<8x128xi32>
    %c16_i32_31 = arith.constant 16 : i32
    %65 = vector.broadcast %c16_i32_31 : i32 to vector<8x128xi32>
    %66 = arith.cmpi sge, %62, %65 : vector<8x128xi32>
    %c32_i32_32 = arith.constant 32 : i32
    %67 = vector.broadcast %c32_i32_32 : i32 to vector<8x128xi32>
    %68 = arith.cmpi slt, %62, %67 : vector<8x128xi32>
    %69 = arith.andi %66, %68 : vector<8x128xi1>
    %c32_i32_33 = arith.constant 32 : i32
    %70 = vector.broadcast %c32_i32_33 : i32 to vector<8x128xi32>
    %71 = arith.cmpi slt, %62, %70 : vector<8x128xi32>
    %cst_34 = arith.constant 0xFF800000 : f32
    %72 = vector.broadcast %cst_34 : f32 to vector<8x128xf32>
    %73 = arith.select %64, %61, %72 : vector<8x128xi1>, vector<8x128xf32>
    %cst_35 = arith.constant dense<0xFF800000> : vector<8xf32>
    %74 = vector.multi_reduction <maximumf>, %73, %cst_35 [1] : vector<8x128xf32> to vector<8xf32>
    %75 = vector.shape_cast %74 : vector<8xf32> to vector<8x1xf32>
    %cst_36 = arith.constant 0xFF800000 : f32
    %76 = vector.broadcast %cst_36 : f32 to vector<8x128xf32>
    %77 = arith.select %69, %61, %76 : vector<8x128xi1>, vector<8x128xf32>
    %cst_37 = arith.constant dense<0xFF800000> : vector<8xf32>
    %78 = vector.multi_reduction <maximumf>, %77, %cst_37 [1] : vector<8x128xf32> to vector<8xf32>
    %79 = vector.shape_cast %78 : vector<8xf32> to vector<8x1xf32>
    %80 = vector.shape_cast %75 : vector<8x1xf32> to vector<8x1xf32>
    %81 = vector.broadcast %80 : vector<8x1xf32> to vector<8x128xf32>
    %82 = vector.shape_cast %79 : vector<8x1xf32> to vector<8x1xf32>
    %83 = vector.broadcast %82 : vector<8x1xf32> to vector<8x128xf32>
    %84 = arith.select %64, %81, %83 : vector<8x128xi1>, vector<8x128xf32>
    %85 = arith.subf %61, %84 : vector<8x128xf32>
    %86 = math.exp %85 : vector<8x128xf32>
    %cst_38 = arith.constant 0.000000e+00 : f32
    %87 = vector.broadcast %cst_38 : f32 to vector<8x128xf32>
    %88 = arith.select %64, %86, %87 : vector<8x128xi1>, vector<8x128xf32>
    %cst_39 = arith.constant dense<0.000000e+00> : vector<8xf32>
    %89 = vector.multi_reduction <add>, %88, %cst_39 [1] : vector<8x128xf32> to vector<8xf32>
    %90 = vector.shape_cast %89 : vector<8xf32> to vector<8x1xf32>
    %cst_40 = arith.constant 0.000000e+00 : f32
    %91 = vector.broadcast %cst_40 : f32 to vector<8x128xf32>
    %92 = arith.select %69, %86, %91 : vector<8x128xi1>, vector<8x128xf32>
    %cst_41 = arith.constant dense<0.000000e+00> : vector<8xf32>
    %93 = vector.multi_reduction <add>, %92, %cst_41 [1] : vector<8x128xf32> to vector<8xf32>
    %94 = vector.shape_cast %93 : vector<8xf32> to vector<8x1xf32>
    %95 = vector.shape_cast %90 : vector<8x1xf32> to vector<8x1xf32>
    %96 = vector.broadcast %95 : vector<8x1xf32> to vector<8x128xf32>
    %97 = vector.shape_cast %94 : vector<8x1xf32> to vector<8x1xf32>
    %98 = vector.broadcast %97 : vector<8x1xf32> to vector<8x128xf32>
    %99 = arith.select %64, %96, %98 : vector<8x128xi1>, vector<8x128xf32>
    %100 = tpu.reciprocal %99 {approx = true} : vector<8x128xf32> -> vector<8x128xf32>
    %101 = arith.mulf %86, %100 : vector<8x128xf32>
    %cst_42 = arith.constant 0.000000e+00 : f32
    %102 = vector.broadcast %cst_42 : f32 to vector<8x128xf32>
    %103 = arith.select %71, %101, %102 : vector<8x128xi1>, vector<8x128xf32>
    %c0_43 = arith.constant 0 : index
    %c0_44 = arith.constant 0 : index
    %104 = vector.load %arg6[%c0_43, %c0_44] : memref<8x128xf32, #tpu.memory_space<vmem>>, vector<8x128xf32>
    tpu.vector_store %arg6[%c0_43, %c0_44], %103 {strides = array<i32>} : memref<8x128xf32, #tpu.memory_space<vmem>>, vector<8x128xf32>,
    return
  }
}

</mosaic_0001>

<llo_original>
// kernel: tpu_custom_call.1
$region0: #{tpu_custom_call.1}
  #allocation0 [shape = 'u32[]', space=smem, size = 0x4, offset = 0x4, fixed_abs, tag = 'smem constant byte address 0x4 - core index']
  #allocation1 [shape = 'u32[72,128]{1,0:T(1,128)}', space=vmem, size = 0x9000, scoped, tag = 'internal scratch']
  %s0 = inlined_call_operand.hbm [shape: bf16[8,64], index: 0, kind: input, shape index: {}]
  %s1 = inlined_call_operand.hbm [shape: bf16[8,8], index: 1, kind: input, shape index: {}]
  %s2 = inlined_call_operand.hbm [shape: bf16[64,128], index: 2, kind: input, shape index: {}]
  %s3 = inlined_call_operand.hbm [shape: bf16[272,128], index: 3, kind: input, shape index: {}]
  %s4 = inlined_call_operand.hbm [shape: bf16[128,128], index: 4, kind: input, shape index: {}]
  %s5 = inlined_call_operand.hbm [shape: f32[8,128], index: 5, kind: input, shape index: {}]
  %s6 = inlined_call_operand.hbm [shape: f32[8,128], index: 6, kind: output, shape index: {}]
  %s7 = sld [smem:[#allocation0]]
  $region58: #{tpu_custom_call.1} parent=0
    _
  %s9 = ssub.s32 1, %s7
  %s10 = scalar_select 0, %s9, %s7
  $region1: #{tpu_custom_call.1} parent=0
    #allocation2 [shape = 'u8[2048]{0}', space=vmem, size = 0x800, scoped, tag = 'input window, operand 0, single buffered']
    #allocation3 [shape = 's32[1]{0}', space=sflag, size = 0x4, scoped, tag = 'scoped memory for tpu_custom_call.1']
    #allocation4 [shape = 's32[1]{0}', space=sflag, size = 0x4, scoped, tag = 'scoped memory for tpu_custom_call.1']
    #allocation5 [shape = 'u8[2048]{0}', space=vmem, size = 0x800, scoped, tag = 'input window, operand 1, single buffered']
    #allocation6 [shape = 's32[1]{0}', space=sflag, size = 0x4, scoped, tag = 'scoped memory for tpu_custom_call.1']
    #allocation7 [shape = 'u8[16384]{0}', space=vmem, size = 0x4000, scoped, tag = 'input window, operand 2, single buffered']
    #allocation8 [shape = 'u8[69632]{0}', space=vmem, size = 0x11000, scoped, tag = 'input window, operand 3, single buffered']
    #allocation9 [shape = 's32[1]{0}', space=sflag, size = 0x4, scoped, tag = 'scoped memory for tpu_custom_call.1']
    #allocation10 [shape = 'u8[32768]{0}', space=vmem, size = 0x8000, scoped, tag = 'input window, operand 4, single buffered']
    #allocation11 [shape = 'u8[4096]{0}', space=vmem, size = 0x1000, scoped, tag = 'input window, operand 5, single buffered']
    #allocation12 [shape = 's32[1]{0}', space=sflag, size = 0x4, scoped, tag = 'scoped memory for tpu_custom_call.1']
    #allocation13 [shape = 'u8[4096]{0}', space=vmem, size = 0x1000, scoped, tag = 'output window, operand 0, single buffered']
    %11 = vsyncpa [#allocation3], 0
    %12 = vsyncpa [#allocation6], 0
    %13 = vsyncpa [#allocation9], 0
    %14 = vsyncpa [#allocation12], 0
    %15 = vsyncpa [#allocation4], 0
    // Predicated region
    $region2: #{tpu_custom_call.1} parent=1 // pred_check
      _
    $region3: #{tpu_custom_call.1} parent=1 // pred_check_branch
      %17 = sbr.rel (0) target = $region5
    $region4: #{tpu_custom_call.1} parent=1 // pred_region
      %19 = vsyncadd [#allocation3], 0
      %s21 = sshll.u32 %s0, 4
      %s22 = int_to_ptr.hbm [resolvable:$true] %s21
      %s23 = sshll.u32 [#allocation2], 4
      %s24 = int_to_ptr.vmem [resolvable:$true] %s23
      %26 = dma.hbm_to_vmem [thread:$0]  %s22, 64, %s24, [#allocation3]
    $region5: #{tpu_custom_call.1} parent=1 // pred_fallthru
      _
    // Predicated region
    $region6: #{tpu_custom_call.1} parent=1 // pred_check
      _
    $region7: #{tpu_custom_call.1} parent=1 // pred_check_branch
      %28 = sbr.rel (0) target = $region9
    $region8: #{tpu_custom_call.1} parent=1 // pred_region
      %30 = vsyncadd [#allocation6], 0
      %s32 = sshll.u32 %s1, 4
      %s33 = int_to_ptr.hbm [resolvable:$true] %s32
      %s34 = sshll.u32 [#allocation5], 4
      %s35 = int_to_ptr.vmem [resolvable:$true] %s34
      %37 = dma.hbm_to_vmem [thread:$0]  %s33, 64, %s35, [#allocation6]
    $region9: #{tpu_custom_call.1} parent=1 // pred_fallthru
      _
    // Predicated region
    $region10: #{tpu_custom_call.1} parent=1 // pred_check
      _
    $region11: #{tpu_custom_call.1} parent=1 // pred_check_branch
      %39 = sbr.rel (0) target = $region13
    $region12: #{tpu_custom_call.1} parent=1 // pred_region
      %41 = vsyncadd [#allocation6], 0
      %s42 = sshll.u32 %s2, 4
      %s43 = int_to_ptr.hbm [resolvable:$true] %s42
      %s44 = sshll.u32 [#allocation7], 4
      %s45 = int_to_ptr.vmem [resolvable:$true] %s44
      %50 = dma.hbm_to_vmem [thread:$0]  %s43, 512, %s45, [#allocation6], 64, 64, 4
    $region13: #{tpu_custom_call.1} parent=1 // pred_fallthru
      _
    // Predicated region
    $region14: #{tpu_custom_call.1} parent=1 // pred_check
      _
    $region15: #{tpu_custom_call.1} parent=1 // pred_check_branch
      %52 = sbr.rel (0) target = $region17
    $region16: #{tpu_custom_call.1} parent=1 // pred_region
      %54 = vsyncadd [#allocation9], 0
      %s55 = sshll.u32 %s3, 4
      %s56 = int_to_ptr.hbm [resolvable:$true] %s55
      %s57 = sshll.u32 [#allocation8], 4
      %s58 = int_to_ptr.vmem [resolvable:$true] %s57
      %63 = dma.hbm_to_vmem [thread:$0]  %s56, 2176, %s58, [#allocation9], 64, 64, 4
    $region17: #{tpu_custom_call.1} parent=1 // pred_fallthru
      _
    // Predicated region
    $region18: #{tpu_custom_call.1} parent=1 // pred_check
      _
    $region19: #{tpu_custom_call.1} parent=1 // pred_check_branch
      %65 = sbr.rel (0) target = $region21
    $region20: #{tpu_custom_call.1} parent=1 // pred_region
      %67 = vsyncadd [#allocation9], 0
      %s68 = sshll.u32 %s4, 4
      %s69 = int_to_ptr.hbm [resolvable:$true] %s68
      %s70 = sshll.u32 [#allocation10], 4
      %s71 = int_to_ptr.vmem [resolvable:$true] %s70
      %76 = dma.hbm_to_vmem [thread:$0]  %s69, 1024, %s71, [#allocation9], 64, 64, 4
    $region21: #{tpu_custom_call.1} parent=1 // pred_fallthru
      _
    // Predicated region
    $region22: #{tpu_custom_call.1} parent=1 // pred_check
      _
    $region23: #{tpu_custom_call.1} parent=1 // pred_check_branch
      %78 = sbr.rel (0) target = $region25
    $region24: #{tpu_custom_call.1} parent=1 // pred_region
      %80 = vsyncadd [#allocation12], 0
      %s82 = sshll.u32 %s5, 4
      %s83 = int_to_ptr.hbm [resolvable:$true] %s82
      %s84 = sshll.u32 [#allocation11], 4
      %s85 = int_to_ptr.vmem [resolvable:$true] %s84
      %87 = dma.hbm_to_vmem [thread:$0]  %s83, 128, %s85, [#allocation12]
    $region25: #{tpu_custom_call.1} parent=1 // pred_fallthru
      _
    // Predicated region
    $region26: #{tpu_custom_call.1} parent=1 // pred_check
      _
    $region27: #{tpu_custom_call.1} parent=1 // pred_check_branch
      %89 = sbr.rel (0) target = $region29
    $region28: #{tpu_custom_call.1} parent=1 // pred_region
      %91 = dma.done [#allocation3], 64
    $region29: #{tpu_custom_call.1} parent=1 // pred_fallthru
      _
    // Predicated region
    $region30: #{tpu_custom_call.1} parent=1 // pred_check
      _
    $region31: #{tpu_custom_call.1} parent=1 // pred_check_branch
      %93 = sbr.rel (0) target = $region33
    $region32: #{tpu_custom_call.1} parent=1 // pred_region
      %95 = dma.done [#allocation6], 64
    $region33: #{tpu_custom_call.1} parent=1 // pred_fallthru
      _
    // Predicated region
    $region34: #{tpu_custom_call.1} parent=1 // pred_check
      _
    $region35: #{tpu_custom_call.1} parent=1 // pred_check_branch
      %97 = sbr.rel (0) target = $region37
    $region36: #{tpu_custom_call.1} parent=1 // pred_region
      %99 = dma.done [#allocation6], 512
    $region37: #{tpu_custom_call.1} parent=1 // pred_fallthru
      _
    // Predicated region
    $region38: #{tpu_custom_call.1} parent=1 // pred_check
      _
    $region39: #{tpu_custom_call.1} parent=1 // pred_check_branch
      %101 = sbr.rel (0) target = $region41
    $region40: #{tpu_custom_call.1} parent=1 // pred_region
      %103 = dma.done [#allocation9], 2176
    $region41: #{tpu_custom_call.1} parent=1 // pred_fallthru
      _
    // Predicated region
    $region42: #{tpu_custom_call.1} parent=1 // pred_check
      _
    $region43: #{tpu_custom_call.1} parent=1 // pred_check_branch
      %105 = sbr.rel (0) target = $region45
    $region44: #{tpu_custom_call.1} parent=1 // pred_region
      %107 = dma.done [#allocation9], 1024
    $region45: #{tpu_custom_call.1} parent=1 // pred_fallthru
      _
    // Predicated region
    $region46: #{tpu_custom_call.1} parent=1 // pred_check
      _
    $region47: #{tpu_custom_call.1} parent=1 // pred_check_branch
      %109 = sbr.rel (0) target = $region49
    $region48: #{tpu_custom_call.1} parent=1 // pred_region
      %111 = dma.done [#allocation12], 128
    $region49: #{tpu_custom_call.1} parent=1 // pred_fallthru
      _
    %v113 = vld [vmem:[#allocation2] sm:$0xf]
    %v114 = vld [vmem:[#allocation5] sm:$0xf]
    %v115 = vld [vmem:[#allocation7] sm:$0xf]
    %v116 = vld [vmem:[#allocation7 + $0x4] sm:$0xf]
    %v117 = vld [vmem:[#allocation7 + $0x8] sm:$0xf]
    %v118 = vld [vmem:[#allocation7 + $0xc] sm:$0xf]
    %v119 = vld [vmem:[#allocation7 + $0x10] sm:$0xf]
    %v120 = vld [vmem:[#allocation7 + $0x14] sm:$0xf]
    %v121 = vld [vmem:[#allocation7 + $0x18] sm:$0xf]
    %v122 = vld [vmem:[#allocation7 + $0x1c] sm:$0xf]
    %v123 = vld [vmem:[#allocation8] sm:$0xf]
    %v124 = vld [vmem:[#allocation8 + $0x4] sm:$0xf]
    %v125 = vld [vmem:[#allocation8 + $0x8] sm:$0xf]
    %v126 = vld [vmem:[#allocation8 + $0xc] sm:$0xf]
    %v127 = vld [vmem:[#allocation8 + $0x10] sm:$0xf]
    %v128 = vld [vmem:[#allocation8 + $0x14] sm:$0xf]
    %v129 = vld [vmem:[#allocation8 + $0x18] sm:$0xf]
    %v130 = vld [vmem:[#allocation8 + $0x1c] sm:$0xf]
    %v131 = vld [vmem:[#allocation8 + $0x20] sm:$0xf]
    %v132 = vld [vmem:[#allocation8 + $0x24] sm:$0xf]
    %v133 = vld [vmem:[#allocation8 + $0x28] sm:$0xf]
    %v134 = vld [vmem:[#allocation8 + $0x2c] sm:$0xf]
    %v135 = vld [vmem:[#allocation8 + $0x30] sm:$0xf]
    %v136 = vld [vmem:[#allocation8 + $0x34] sm:$0xf]
    %v137 = vld [vmem:[#allocation8 + $0x38] sm:$0xf]
    %v138 = vld [vmem:[#allocation8 + $0x3c] sm:$0xf]
    %v139 = vld [vmem:[#allocation8 + $0x40] sm:$0xf]
    %v140 = vld [vmem:[#allocation8 + $0x48] sm:$0xf]
    %v141 = vld [vmem:[#allocation8 + $0x4c] sm:$0xf]
    %v142 = vld [vmem:[#allocation8 + $0x50] sm:$0xf]
    %v143 = vld [vmem:[#allocation8 + $0x54] sm:$0xf]
    %v144 = vld [vmem:[#allocation8 + $0x58] sm:$0xf]
    %v145 = vld [vmem:[#allocation8 + $0x5c] sm:$0xf]
    %v146 = vld [vmem:[#allocation8 + $0x60] sm:$0xf]
    %v147 = vld [vmem:[#allocation8 + $0x64] sm:$0xf]
    %v148 = vld [vmem:[#allocation8 + $0x68] sm:$0xf]
    %v149 = vld [vmem:[#allocation8 + $0x6c] sm:$0xf]
    %v150 = vld [vmem:[#allocation8 + $0x70] sm:$0xf]
    %v151 = vld [vmem:[#allocation8 + $0x74] sm:$0xf]
    %v152 = vld [vmem:[#allocation8 + $0x78] sm:$0xf]
    %v153 = vld [vmem:[#allocation8 + $0x7c] sm:$0xf]
    %v154 = vld [vmem:[#allocation8 + $0x80] sm:$0xf]
    %v155 = vld [vmem:[#allocation8 + $0x84] sm:$0xf]
    %v156 = vld [vmem:[#allocation10] sm:$0xf]
    %v157 = vld [vmem:[#allocation10 + $0x4] sm:$0xf]
    %v158 = vld [vmem:[#allocation10 + $0x8] sm:$0xf]
    %v159 = vld [vmem:[#allocation10 + $0xc] sm:$0xf]
    %v160 = vld [vmem:[#allocation10 + $0x10] sm:$0xf]
    %v161 = vld [vmem:[#allocation10 + $0x14] sm:$0xf]
    %v162 = vld [vmem:[#allocation10 + $0x18] sm:$0xf]
    %v163 = vld [vmem:[#allocation10 + $0x1c] sm:$0xf]
    %v164 = vld [vmem:[#allocation10 + $0x20] sm:$0xf]
    %v165 = vld [vmem:[#allocation10 + $0x24] sm:$0xf]
    %v166 = vld [vmem:[#allocation10 + $0x28] sm:$0xf]
    %v167 = vld [vmem:[#allocation10 + $0x2c] sm:$0xf]
    %v168 = vld [vmem:[#allocation10 + $0x30] sm:$0xf]
    %v169 = vld [vmem:[#allocation10 + $0x34] sm:$0xf]
    %v170 = vld [vmem:[#allocation10 + $0x38] sm:$0xf]
    %v171 = vld [vmem:[#allocation10 + $0x3c] sm:$0xf]
    %v172 = vld [vmem:[#allocation11] sm:$0x1]
    %v173 = vld [vmem:[#allocation11 + $0x1] sm:$0x1]
    %v174 = vld [vmem:[#allocation11 + $0x2] sm:$0x1]
    %v175 = vld [vmem:[#allocation11 + $0x3] sm:$0x1]
    %v176 = vld [vmem:[#allocation11 + $0x4] sm:$0x1]
    %v177 = vld [vmem:[#allocation11 + $0x5] sm:$0x1]
    %v178 = vperm.slane %v172, 0
    %v187 = vunpack.c.l.b16 %v115
    %v188 = vunpack.c.l.b16 %v116
    %v189 = vunpack.c.l.b16 %v117
    %v190 = vunpack.c.l.b16 %v118
    %v191 = vunpack.c.l.b16 %v119
    %v192 = vunpack.c.l.b16 %v120
    %v193 = vunpack.c.l.b16 %v121
    %v194 = vunpack.c.l.b16 %v122
    %v195 = vpack.c.b16 %v188, %v187
    %v196 = vpack.c.b16 %v190, %v189
    %v197 = vpack.c.b16 %v192, %v191
    %v198 = vpack.c.b16 %v194, %v193
    %vm203 = vcmask 523264
    %v205 = vsel %vm203, %v113, 0
    %207 = vmatpush.bf16.msra.mxu0 0
    %208 = vmatpush.bf16.msra.mxu0 0
    %209 = vmatpush.bf16.msra.mxu0 0
    %210 = vmatpush.bf16.msra.mxu0 0
    %211 = vmatpush.bf16.msra.mxu0 %v198
    %212 = vmatpush.bf16.msra.mxu0 %v197
    %213 = vmatpush.bf16.msra.mxu0 %v196
    %214 = vmatpush.bf16.msra.mxu0 %v195
    %215 = vmatmul.bf16.gmra.mxu0 %v205
    %v216 = vpop.f32.mrf.mxu0
    %v217 = vadd.f32 %v178, %v216
    %v218 = vpop.f32.mrf.mxu0
    %219 = vdwg.mxu0
    %v220 = vlaneseq
    %v221 = vand.u32 %v220, 127
    %vm222 = vcmp.lt.s32.totalorder %v221, 32
    %v223 = vsel %vm222, %v217, 0.0
    %224 = vadd.xlane.f32.xlu0 %v223
    %v225 = vpop.xlane.xlu0 %224
    %v226 = vmul.f32 %v225, 0.03125
    %v227 = vsub.f32 %v217, %v226
    %v228 = vsel %vm222, %v227, 0.0
    %v229 = vmul.f32 %v228, %v228
    %230 = vadd.xlane.f32.xlu0 %v229
    %v231 = vpop.xlane.xlu0 %230
    %v232 = vmul.f32 %v231, 0.03125
    %v233 = vadd.f32 %v232, 1e-05
    %v234 = vrsqrt.pop %v233
    %v235 = vmul.f32 %v234, %v233
    %v236 = vmul.f32 %v235, %v234
    %v237 = vmul.f32 0.5, %v236
    %v238 = vsub.f32 1.5, %v237
    %v239 = vmul.f32 %v234, %v238
    %vm240 = vweird.f32 %v233
    %vm241 = vweird.f32 %v234
    %vm242 = vmor %vm240, %vm241
    %v243 = vsel %vm242, %v234, %v239
    %v244 = vmul.f32 %v228, %v243
    %v245 = vperm.slane %v173, 0
    %v246 = vmul.f32 %v244, %v245
    %v247 = vperm.slane %v174, 0
    %v248 = vadd.f32 %v246, %v247
    %v249 = vtanh.pop %v248
    %v250 = vpack.c.bf16 %v249, %v249
    %vm251 = vcmask 64512
    %v253 = vsel %vm251, %v114, 0
    %vm255 = vcmask 1043456
    %v257 = vsel %vm255, %v139, 0
    %259 = vmatpush.bf16.msra.mxu0 0
    %260 = vmatpush.bf16.msra.mxu0 0
    %261 = vmatpush.bf16.msra.mxu0 0
    %262 = vmatpush.bf16.msra.mxu0 0
    %263 = vmatpush.bf16.msra.mxu0 0
    %264 = vmatpush.bf16.msra.mxu0 0
    %265 = vmatpush.bf16.msra.mxu0 0
    %266 = vmatpush.bf16.msra.mxu0 %v257
    %267 = vmatmul.bf16.gmra.mxu0 %v253
    %v268 = vpop.f32.mrf.mxu0
    %v269 = vadd.f32 0.0, %v268
    %v270 = vpop.f32.mrf.mxu0
    %271 = vdwg.mxu0
    %v288 = vunpack.c.l.b16 %v123
    %v289 = vunpack.c.l.b16 %v124
    %v290 = vunpack.c.l.b16 %v125
    %v291 = vunpack.c.l.b16 %v126
    %v292 = vunpack.c.l.b16 %v127
    %v293 = vunpack.c.l.b16 %v128
    %v294 = vunpack.c.l.b16 %v129
    %v295 = vunpack.c.l.b16 %v130
    %v296 = vunpack.c.l.b16 %v131
    %v297 = vunpack.c.l.b16 %v132
    %v298 = vunpack.c.l.b16 %v133
    %v299 = vunpack.c.l.b16 %v134
    %v300 = vunpack.c.l.b16 %v135
    %v301 = vunpack.c.l.b16 %v136
    %v302 = vunpack.c.l.b16 %v137
    %v303 = vunpack.c.l.b16 %v138
    %v304 = vpack.c.b16 %v289, %v288
    %v305 = vpack.c.b16 %v291, %v290
    %v306 = vpack.c.b16 %v293, %v292
    %v307 = vpack.c.b16 %v295, %v294
    %v308 = vpack.c.b16 %v297, %v296
    %v309 = vpack.c.b16 %v299, %v298
    %v310 = vpack.c.b16 %v301, %v300
    %v311 = vpack.c.b16 %v303, %v302
    %320 = vmatpush.bf16.msra.mxu0 %v311
    %321 = vmatpush.bf16.msra.mxu0 %v310
    %322 = vmatpush.bf16.msra.mxu0 %v309
    %323 = vmatpush.bf16.msra.mxu0 %v308
    %324 = vmatpush.bf16.msra.mxu0 %v307
    %325 = vmatpush.bf16.msra.mxu0 %v306
    %326 = vmatpush.bf16.msra.mxu0 %v305
    %327 = vmatpush.bf16.msra.mxu0 %v304
    %328 = vmatmul.bf16.gmra.mxu0 %v250
    %v329 = vpop.f32.mrf.mxu0
    %v330 = vadd.f32 %v269, %v329
    %v331 = vpop.f32.mrf.mxu0
    %332 = vdwg.mxu0
    %v333 = vperm.slane %v175, 0
    %v334 = vadd.f32 %v330, %v333
    %v335 = vmax.f32 %v334, 0.0
    %v336 = vpack.c.bf16 %v335, %v335
    %v337 = vperm.slane %v176, 0
    %v354 = vunpack.c.l.b16 %v140
    %v355 = vunpack.c.l.b16 %v141
    %v356 = vunpack.c.l.b16 %v142
    %v357 = vunpack.c.l.b16 %v143
    %v358 = vunpack.c.l.b16 %v144
    %v359 = vunpack.c.l.b16 %v145
    %v360 = vunpack.c.l.b16 %v146
    %v361 = vunpack.c.l.b16 %v147
    %v362 = vunpack.c.l.b16 %v148
    %v363 = vunpack.c.l.b16 %v149
    %v364 = vunpack.c.l.b16 %v150
    %v365 = vunpack.c.l.b16 %v151
    %v366 = vunpack.c.l.b16 %v152
    %v367 = vunpack.c.l.b16 %v153
    %v368 = vunpack.c.l.b16 %v154
    %v369 = vunpack.c.l.b16 %v155
    %v370 = vpack.c.b16 %v355, %v354
    %v371 = vpack.c.b16 %v357, %v356
    %v372 = vpack.c.b16 %v359, %v358
    %v373 = vpack.c.b16 %v361, %v360
    %v374 = vpack.c.b16 %v363, %v362
    %v375 = vpack.c.b16 %v365, %v364
    %v376 = vpack.c.b16 %v367, %v366
    %v377 = vpack.c.b16 %v369, %v368
    %386 = vmatpush.bf16.msra.mxu0 %v377
    %387 = vmatpush.bf16.msra.mxu0 %v376
    %388 = vmatpush.bf16.msra.mxu0 %v375
    %389 = vmatpush.bf16.msra.mxu0 %v374
    %390 = vmatpush.bf16.msra.mxu0 %v373
    %391 = vmatpush.bf16.msra.mxu0 %v372
    %392 = vmatpush.bf16.msra.mxu0 %v371
    %393 = vmatpush.bf16.msra.mxu0 %v370
    %394 = vmatmul.bf16.gmra.mxu0 %v336
    %v395 = vpop.f32.mrf.mxu0
    %v396 = vadd.f32 %v337, %v395
    %v397 = vpop.f32.mrf.mxu0
    %398 = vdwg.mxu0
    %v399 = vmax.f32 %v396, 0.0
    %v400 = vpack.c.bf16 %v399, %v399
    %v401 = vperm.slane %v177, 0
    %v418 = vunpack.c.l.b16 %v156
    %v419 = vunpack.c.l.b16 %v157
    %v420 = vunpack.c.l.b16 %v158
    %v421 = vunpack.c.l.b16 %v159
    %v422 = vunpack.c.l.b16 %v160
    %v423 = vunpack.c.l.b16 %v161
    %v424 = vunpack.c.l.b16 %v162
    %v425 = vunpack.c.l.b16 %v163
    %v426 = vunpack.c.l.b16 %v164
    %v427 = vunpack.c.l.b16 %v165
    %v428 = vunpack.c.l.b16 %v166
    %v429 = vunpack.c.l.b16 %v167
    %v430 = vunpack.c.l.b16 %v168
    %v431 = vunpack.c.l.b16 %v169
    %v432 = vunpack.c.l.b16 %v170
    %v433 = vunpack.c.l.b16 %v171
    %v434 = vpack.c.b16 %v419, %v418
    %v435 = vpack.c.b16 %v421, %v420
    %v436 = vpack.c.b16 %v423, %v422
    %v437 = vpack.c.b16 %v425, %v424
    %v438 = vpack.c.b16 %v427, %v426
    %v439 = vpack.c.b16 %v429, %v428
    %v440 = vpack.c.b16 %v431, %v430
    %v441 = vpack.c.b16 %v433, %v432
    %450 = vmatpush.bf16.msra.mxu0 %v441
    %451 = vmatpush.bf16.msra.mxu0 %v440
    %452 = vmatpush.bf16.msra.mxu0 %v439
    %453 = vmatpush.bf16.msra.mxu0 %v438
    %454 = vmatpush.bf16.msra.mxu0 %v437
    %455 = vmatpush.bf16.msra.mxu0 %v436
    %456 = vmatpush.bf16.msra.mxu0 %v435
    %457 = vmatpush.bf16.msra.mxu0 %v434
    %458 = vmatmul.bf16.gmra.mxu0 %v400
    %v459 = vpop.f32.mrf.mxu0
    %v460 = vadd.f32 %v401, %v459
    %v461 = vpop.f32.mrf.mxu0
    %462 = vdwg.mxu0
    %vm463 = vcmp.lt.s32.totalorder %v221, 16
    %vm464 = vcmp.ge.s32.totalorder %v221, 16
    %vm465 = vmand %vm464, %vm222
    %v466 = vsel %vm463, %v460, -inf
    %467 = vmax.xlane.f32.xlu0 %v466
    %v468 = vpop.xlane.xlu0 %467
    %v469 = vsel %vm465, %v460, -inf
    %470 = vmax.xlane.f32.xlu0 %v469
    %v471 = vpop.xlane.xlu0 %470
    %v472 = vsel %vm463, %v468, %v471
    %v473 = vsub.f32 %v460, %v472
    %v474 = vmul.f32 %v473, 1.442695
    %v475 = vpow.pop %v474
    %v476 = vsel %vm463, %v475, 0.0
    %477 = vadd.xlane.f32.xlu0 %v476
    %v478 = vpop.xlane.xlu0 %477
    %v479 = vsel %vm465, %v475, 0.0
    %480 = vadd.xlane.f32.xlu0 %v479
    %v481 = vpop.xlane.xlu0 %480
    %v482 = vsel %vm463, %v478, %v481
    %v483 = vrcp.pop %v482
    %v484 = vmul.f32 %v475, %v483
    %v485 = vsel %vm222, %v484, 0.0
    %486 = vst [vmem:[#allocation13] sm:$0xff] %v485
    // Predicated region
    $region50: #{tpu_custom_call.1} parent=1 // pred_check
      _
    $region51: #{tpu_custom_call.1} parent=1 // pred_check_branch
      %488 = sbr.rel (0) target = $region53
    $region52: #{tpu_custom_call.1} parent=1 // pred_region
      %490 = vsyncadd [#allocation4], 0
      %s492 = sshll.u32 [#allocation13], 4
      %s493 = int_to_ptr.vmem [resolvable:$true] %s492
      %s494 = sshll.u32 %s6, 4
      %s495 = int_to_ptr.hbm [resolvable:$true] %s494
      %497 = dma.vmem_to_hbm [thread:$0]  %s493, 128, %s495, [#allocation4]
    $region53: #{tpu_custom_call.1} parent=1 // pred_fallthru
      _
    // Predicated region
    $region54: #{tpu_custom_call.1} parent=1 // pred_check
      _
    $region55: #{tpu_custom_call.1} parent=1 // pred_check_branch
      %499 = sbr.rel (0) target = $region57
    $region56: #{tpu_custom_call.1} parent=1 // pred_region
      %501 = dma.done [#allocation4], 128
    $region57: #{tpu_custom_call.1} parent=1 // pred_fallthru
      _
    %502 = vsyncpa [#allocation3], 1
    %503 = vsyncpa [#allocation6], 1
    %504 = vsyncpa [#allocation9], 1
    %505 = vsyncpa [#allocation12], 1
    %506 = vsyncpa [#allocation4], 1

</llo_original>
